<compile_context>
chip_gen: v5e
topology: v5e:2x2
jax: 0.10.0
libtpu: 0.0.40
codegen_flags: <defaults>
</compile_context>

<pallas_src>
import functools
import jax
import jax.numpy as jnp
from jax.experimental import pallas as pl
from jax.experimental.pallas import tpu as pltpu

BN_EPS = 1e-5
GIN_EPS = 0.0          # PyG GINConv default (train_eps=False)
LANE = 128
SUBLANE = 8
EPI_CHUNK = 256        # epilogue row-slab size (keeps z inside the register file)


def _round_up(x, m):
    return (x + m - 1) // m * m


def _pad2(a, rows, cols, dtype=None):
    dtype = a.dtype if dtype is None else dtype
    out = jnp.zeros((rows, cols), dtype)
    return out.at[: a.shape[0], : a.shape[1]].set(a.astype(dtype))


def _vmem_plan():
    """Per-generation VMEM limit + planning budget (v7x: 64 MiB physical, v5e/v6e: 128 MiB)."""
    try:
        cap = int(getattr(pltpu.get_tpu_info(), "vmem_capacity_bytes"))
    except Exception:
        cap = 64 * 1024 * 1024                          # conservative: assume v7x
    limit = min(cap * 3 // 4, 96 * 1024 * 1024)         # 48 MiB on v7x, 96 MiB on v5e/v6e
    budget = int(limit * 0.85)                          # headroom for Mosaic internal scratch
    return limit, budget


def _pick_tile(n_pad, target):
    """Largest multiple of 128 <= target that divides n_pad."""
    t = max(LANE, min(target, n_pad))
    t = (t // LANE) * LANE
    while n_pad % t:
        t -= LANE
    return t


def _plan_conv(n_pad, f_pad, h_pad, g_pad, vmem_budget):
    """Pick (tm, tk, x_resident) so adj double-buffers + (resident) x + weights + acc fit VMEM."""
    tm = _pick_tile(n_pad, 512)

    def fixed(tm_):
        return (2 * 2 * (f_pad * h_pad + h_pad * h_pad)   # w1/w2 bf16, double buffered
                + 2 * 4 * 2 * h_pad                       # b1/b2 f32, double buffered
                + 2 * 2 * tm_ * g_pad                     # pool block bf16, double buffered
                + 4 * tm_ * f_pad                         # f32 accumulator scratch
                + 2 * 2 * tm_ * h_pad                     # h output block bf16, double buffered
                + 2 * 4 * g_pad * h_pad)                  # pooled output block f32, double buffered

    x_res_bytes = 2 * 2 * n_pad * f_pad                   # fully resident x (bf16, 2 buffers)
    x_resident = fixed(tm) + x_res_bytes + 2 * tm * LANE <= vmem_budget

    tk = _pick_tile(n_pad, 2048)

    def total(tm_, tk_):
        x_cost = x_res_bytes if x_resident else 2 * 2 * tk_ * f_pad
        return fixed(tm_) + x_cost + 2 * tm_ * tk_        # int8 adj tile, double buffered

    while tk > LANE and total(tm, tk) > vmem_budget:
        tk = _pick_tile(n_pad, tk - LANE)
    while tm > LANE and total(tm, tk) > vmem_budget:
        tm = _pick_tile(n_pad, tm - LANE)
    return tm, tk, x_resident


# --------------------------------------------------------------------------------------
# GINConv kernel: out = MLP(A' @ x)  with A' = A + (1+eps)*I  (self term folded into the int8 adj)
#                 MLP = Linear(+folded BN) -> ReLU -> Linear -> ReLU
# Also emits the per-row-tile partial of global_add_pool on VMEM-resident data.
# --------------------------------------------------------------------------------------
def _gin_conv_kernel(adj_ref, x_ref, pool_ref, w1_ref, b1_ref, w2_ref, b2_ref,
                     h_ref, pooled_ref, acc_ref, *, tm, tk, epi_chunk, x_resident):
    k = pl.program_id(1)

    @pl.when(k == 0)
    def _():
        acc_ref[...] = jnp.zeros_like(acc_ref)

    # int8 adjacency -> bf16 right before the MXU dot; f32 accumulation.
    adj = adj_ref[...].astype(jnp.bfloat16)
    if x_resident:
        x_blk = x_ref[pl.ds(pl.multiple_of(k * tk, tk), tk), :]
    else:
        x_blk = x_ref[...]
    acc_ref[...] += jnp.dot(adj, x_blk, preferred_element_type=jnp.float32)

    @pl.when(k == pl.num_programs(1) - 1)
    def _():
        g_pad = pool_ref.shape[1]
        h_pad = w1_ref.shape[1]
        n_chunks = tm // epi_chunk

        def chunk(c, pooled_acc):
            off = pl.multiple_of(c * epi_chunk, epi_chunk)
            # MLP epilogue: bf16 MXU inputs, f32 accumulation; bias add / ReLU in f32.
            a = acc_ref[pl.ds(off, epi_chunk), :].astype(jnp.bfloat16)
            z = jnp.dot(a, w1_ref[...], preferred_element_type=jnp.float32) + b1_ref[...]
            z = jnp.maximum(z, 0.0)
            z = jnp.dot(z.astype(jnp.bfloat16), w2_ref[...],
                        preferred_element_type=jnp.float32) + b2_ref[...]
            z = jnp.maximum(z, 0.0)
            zb = z.astype(jnp.bfloat16)
            h_ref[pl.ds(off, epi_chunk), :] = zb
            # Fused global_add_pool partial: pool_chunk^T @ z on data already in VMEM.
            p = pool_ref[pl.ds(off, epi_chunk), :]                       # (chunk, G) bf16
            return pooled_acc + jax.lax.dot_general(
                p, zb, (((0,), (0,)), ((), ())),
                preferred_element_type=jnp.float32)                      # (G, H)

        pooled = jax.lax.fori_loop(0, n_chunks, chunk,
                                   jnp.zeros((g_pad, h_pad), jnp.float32), unroll=True)
        pooled_ref[0, :, :] = pooled


def gin_conv(adj_i8, x_bf16, pool_t, w1, b1, w2, b2, *, vmem_budget, vmem_limit):
    n_pad = adj_i8.shape[0]
    f_pad = x_bf16.shape[1]
    h_pad = w1.shape[1]
    g_pad = pool_t.shape[1]

    tm, tk, x_resident = _plan_conv(n_pad, f_pad, h_pad, g_pad, vmem_budget)
    epi_chunk = _pick_tile(tm, EPI_CHUNK)
    n_row_tiles = n_pad // tm
    n_k_tiles = n_pad // tk

    if x_resident:
        # Loaded once, stays resident in VMEM across the whole grid (no per-row-tile re-streaming).
        x_spec = pl.BlockSpec((n_pad, f_pad), lambda i, k: (0, 0))
    else:
        x_spec = pl.BlockSpec((tk, f_pad), lambda i, k: (k, 0))

    kernel = functools.partial(_gin_conv_kernel, tm=tm, tk=tk,
                               epi_chunk=epi_chunk, x_resident=x_resident)

    # TODO(synk): on v7x, pipeline_mode=pl.Buffered(3) on the adj BlockSpec is worth ~5-10%.
    h_out, pooled_part = pl.pallas_call(
        kernel,
        out_shape=(
            jax.ShapeDtypeStruct((n_pad, h_pad), jnp.bfloat16),
            jax.ShapeDtypeStruct((n_row_tiles, g_pad, h_pad), jnp.float32),
        ),
        grid_spec=pltpu.PrefetchScalarGridSpec(
            num_scalar_prefetch=0,
            grid=(n_row_tiles, n_k_tiles),
            in_specs=[
                pl.BlockSpec((tm, tk), lambda i, k: (i, k)),         # adj tile (int8)
                x_spec,                                              # x (resident or blocked, bf16)
                pl.BlockSpec((tm, g_pad), lambda i, k: (i, 0)),      # pooling rows (bf16)
                pl.BlockSpec((f_pad, h_pad), lambda i, k: (0, 0)),   # w1 (BN folded, bf16)
                pl.BlockSpec((1, h_pad), lambda i, k: (0, 0)),       # b1 (BN folded, f32)
                pl.BlockSpec((h_pad, h_pad), lambda i, k: (0, 0)),   # w2 (bf16)
                pl.BlockSpec((1, h_pad), lambda i, k: (0, 0)),       # b2 (f32)
            ],
            out_specs=(
                pl.BlockSpec((tm, h_pad), lambda i, k: (i, 0)),
                pl.BlockSpec((1, g_pad, h_pad), lambda i, k: (i, 0, 0)),
            ),
            scratch_shapes=[pltpu.VMEM((tm, f_pad), jnp.float32)],
        ),
        compiler_params=pltpu.CompilerParams(
            dimension_semantics=("parallel", "arbitrary"),
            vmem_limit_bytes=vmem_limit,
        ),
    )(adj_i8, x_bf16, pool_t, w1, b1, w2, b2)

    pooled = jnp.sum(pooled_part, axis=0)   # tiny [row_tiles, G, H] -> [G, H] reduction
    return h_out, pooled


# --------------------------------------------------------------------------------------
# Head: cat(p1,p2,p3) @ W1 + b1 -> ReLU -> (dropout=id) -> W2 + b2 -> logits, log_softmax.
# cat(...) @ W1 == p1 @ W1[:H] + p2 @ W1[H:2H] + p3 @ W1[2H:3H].
# --------------------------------------------------------------------------------------
def _head_kernel(p1_ref, p2_ref, p3_ref, w1a_ref, w1b_ref, w1c_ref, b1_ref,
                 w2_ref, b2_ref, logits_ref, logp_ref, *, num_classes):
    h = (jnp.dot(p1_ref[...], w1a_ref[...], preferred_element_type=jnp.float32)
         + jnp.dot(p2_ref[...], w1b_ref[...], preferred_element_type=jnp.float32)
         + jnp.dot(p3_ref[...], w1c_ref[...], preferred_element_type=jnp.float32)
         + b1_ref[...])
    h = jnp.maximum(h, 0.0)
    # dropout(p=0.5) is identity in eval mode
    logits = jnp.dot(h, w2_ref[...], preferred_element_type=jnp.float32) + b2_ref[...]
    logits_ref[...] = logits
    # log_softmax over the real class lanes only (padded lanes masked out).
    col = jax.lax.broadcasted_iota(jnp.int32, logits.shape, 1)
    masked = jnp.where(col < num_classes, logits, -1e30)
    m = jnp.max(masked, axis=1, keepdims=True)
    lse = m + jnp.log(jnp.sum(jnp.exp(masked - m), axis=1, keepdims=True))
    logp_ref[...] = logits - lse


def gin_head(p1, p2, p3, w1a, w1b, w1c, b1, w2, b2, num_classes):
    g_pad = p1.shape[0]
    c_pad = w2.shape[1]
    vmem = pl.BlockSpec(memory_space=pltpu.MemorySpace.VMEM)
    args = (p1, p2, p3, w1a, w1b, w1c, b1, w2, b2)
    return pl.pallas_call(
        functools.partial(_head_kernel, num_classes=num_classes),
        out_shape=(jax.ShapeDtypeStruct((g_pad, c_pad), jnp.float32),
                   jax.ShapeDtypeStruct((g_pad, c_pad), jnp.float32)),
        in_specs=[vmem] * len(args),
        out_specs=(vmem, vmem),
    )(*args)


# --------------------------------------------------------------------------------------
# Host-side plumbing: BN folding, lane-dense padding, int8 adjacency, pooling matrix.
# --------------------------------------------------------------------------------------
def _fold_bn(p):
    """Fold eval-mode BatchNorm1d into the preceding Linear (exact in eval semantics)."""
    scale = p["gamma"] * jax.lax.rsqrt(p["var"] + BN_EPS)      # (1, H)
    w1 = p["w1"] * scale
    b1 = (p["b1"] - p["mean"]) * scale + p["beta"]
    return w1, b1


def gin_forward(x, edge_index, batch, params, num_graphs, dim_h):
    n, f_in = x.shape
    num_classes = params["head"]["w_lin2"].shape[1]
    vmem_limit, vmem_budget = _vmem_plan()

    # Padded (lane-dense) sizes.
    n_pad = _round_up(max(n, SUBLANE), LANE)
    if n_pad > 512:
        n_pad = _round_up(n_pad, 512)        # let tm=512 divide the row axis cleanly
    f_pad = _round_up(f_in, LANE)
    h_pad = _round_up(dim_h, LANE)
    g_pad = _round_up(max(num_graphs, SUBLANE), SUBLANE)
    o_pad = _round_up(3 * dim_h, LANE)
    c_pad = _round_up(num_classes, LANE)

    # Dense adjacency A[dst, src] built directly as int8 (edge multiplicities are exact small ints,
    # valid while counts <= 127); (1+eps)*I self term folded into the diagonal (exact for eps=0).
    self_term = 1.0 + GIN_EPS
    assert float(self_term).is_integer(), "non-integer (1+eps) needs a bf16 adjacency"
    src, dst = edge_index[0], edge_index[1]
    adj = jnp.zeros((n_pad, n_pad), jnp.int8)
    adj = adj.at[dst, src].add(jnp.ones(src.shape, jnp.int8))
    diag = jnp.arange(n)
    adj = adj.at[diag, diag].add(jnp.full((n,), int(self_term), jnp.int8))

    # Pooling assignment matrix (transposed: [node, graph]); 0/1 values are exact in bf16.
    pool_t = jnp.zeros((n_pad, g_pad), jnp.bfloat16).at[jnp.arange(n), batch].set(1.0)

    x_pad = _pad2(x, n_pad, f_pad, jnp.bfloat16)

    # Per-conv padded, BN-folded weights (bf16 weights, f32 biases).
    conv_params = []
    for name, in_dim_pad in (("conv1", f_pad), ("conv2", h_pad), ("conv3", h_pad)):
        p = params[name]
        w1f, b1f = _fold_bn(p)
        conv_params.append(dict(
            w1=_pad2(w1f, in_dim_pad, h_pad, jnp.bfloat16),
            b1=_pad2(b1f, 1, h_pad, jnp.float32),
            w2=_pad2(p["w2"], h_pad, h_pad, jnp.bfloat16),
            b2=_pad2(p["b2"], 1, h_pad, jnp.float32),
        ))

    h = x_pad
    pooled = []
    for cp in conv_params:
        h, pg = gin_conv(adj, h, pool_t, cp["w1"], cp["b1"], cp["w2"], cp["b2"],
                         vmem_budget=vmem_budget, vmem_limit=vmem_limit)
        pooled.append(pg)

    # Head weights, padded lane-dense; lin1 split into the three H-blocks of its input.
    hp = params["head"]
    w1 = hp["w_lin1"]
    w1a = _pad2(w1[0:dim_h, :], h_pad, o_pad)
    w1b = _pad2(w1[dim_h:2 * dim_h, :], h_pad, o_pad)
    w1c = _pad2(w1[2 * dim_h:3 * dim_h, :], h_pad, o_pad)
    b1 = _pad2(hp["b_lin1"], 1, o_pad)
    w2 = _pad2(hp["w_lin2"], o_pad, c_pad)
    b2 = _pad2(hp["b_lin2"], 1, c_pad)

    logits_p, logp_p = gin_head(pooled[0], pooled[1], pooled[2],
                                w1a, w1b, w1c, b1, w2, b2, num_classes)
    return logits_p[:num_graphs, :num_classes], logp_p[:num_graphs, :num_classes]


# --------------------------------------------------------------------------------------
# Pure-JAX f32 reference (eval semantics) for a numerical self-check.
# --------------------------------------------------------------------------------------
def _reference_forward(x, edge_index, batch, params, num_graphs):
    src, dst = edge_index[0], edge_index[1]

    def conv(h, p):
        agg = jnp.zeros_like(h).at[dst].add(h[src]) + (1.0 + GIN_EPS) * h
        z = agg @ p["w1"] + p["b1"]
        z = (z - p["mean"]) * (p["gamma"] * jax.lax.rsqrt(p["var"] + BN_EPS)) + p["beta"]
        z = jnp.maximum(z, 0.0)
        return jnp.maximum(z @ p["w2"] + p["b2"], 0.0)

    h1 = conv(x, params["conv1"])
    h2 = conv(h1, params["conv2"])
    h3 = conv(h2, params["conv3"])

    def pool(h):
        return jnp.zeros((num_graphs, h.shape[1]), h.dtype).at[batch].add(h)

    hcat = jnp.concatenate([pool(h1), pool(h2), pool(h3)], axis=1)
    hh = jnp.maximum(hcat @ params["head"]["w_lin1"] + params["head"]["b_lin1"], 0.0)
    logits = hh @ params["head"]["w_lin2"] + params["head"]["b_lin2"]
    return logits, jax.nn.log_softmax(logits, axis=1)


def make_conv_params(key, fin, h):
    ks = jax.random.split(key, 8)
    return dict(
        w1=0.1 * jax.random.normal(ks[0], (fin, h), jnp.float32),
        b1=0.1 * jax.random.normal(ks[1], (1, h), jnp.float32),
        gamma=1.0 + 0.1 * jax.random.normal(ks[2], (1, h), jnp.float32),
        beta=0.1 * jax.random.normal(ks[3], (1, h), jnp.float32),
        mean=0.1 * jax.random.normal(ks[4], (1, h), jnp.float32),
        var=1.0 + 0.1 * jnp.abs(jax.random.normal(ks[5], (1, h), jnp.float32)),
        w2=0.1 * jax.random.normal(ks[6], (h, h), jnp.float32),
        b2=0.1 * jax.random.normal(ks[7], (1, h), jnp.float32),
    )


if __name__ == "__main__":
    N, F_IN, DIM_H, NUM_GRAPHS, NUM_CLASSES = 16, 4, 32, 2, 4

    key = jax.random.PRNGKey(0)
    k_x, k_c1, k_c2, k_c3, k_l1w, k_l1b, k_l2w, k_l2b = jax.random.split(key, 8)

    # node features
    x = jax.random.normal(k_x, (N, F_IN), jnp.float32)

    # deterministic graph: two graphs of 8 nodes, bidirectional ring each
    src, dst = [], []
    per = N // NUM_GRAPHS
    for g in range(NUM_GRAPHS):
        base = g * per
        for i in range(per):
            a, b = base + i, base + (i + 1) % per
            src += [a, b]
            dst += [b, a]
    edge_index = jnp.array([src, dst], jnp.int32)
    batch = jnp.array([i // per for i in range(N)], jnp.int32)

    params = dict(
        conv1=make_conv_params(k_c1, F_IN, DIM_H),
        conv2=make_conv_params(k_c2, DIM_H, DIM_H),
        conv3=make_conv_params(k_c3, DIM_H, DIM_H),
        head=dict(
            w_lin1=0.1 * jax.random.normal(k_l1w, (3 * DIM_H, 3 * DIM_H), jnp.float32),
            b_lin1=0.1 * jax.random.normal(k_l1b, (1, 3 * DIM_H), jnp.float32),
            w_lin2=0.1 * jax.random.normal(k_l2w, (3 * DIM_H, NUM_CLASSES), jnp.float32),
            b_lin2=0.1 * jax.random.normal(k_l2b, (1, NUM_CLASSES), jnp.float32),
        ),
    )

    logits, logp = gin_forward(x, edge_index, batch, params, NUM_GRAPHS, DIM_H)
    jax.block_until_ready((logits, logp))
    assert logits.shape == (NUM_GRAPHS, NUM_CLASSES) and logp.shape == (NUM_GRAPHS, NUM_CLASSES)

    # Numerical self-check against the f32 reference (loose tolerance: bf16 activations/weights).
    ref_logits, ref_logp = _reference_forward(x, edge_index, batch, params, NUM_GRAPHS)
    err_l = float(jnp.max(jnp.abs(logits - ref_logits)))
    err_p = float(jnp.max(jnp.abs(logp - ref_logp)))
    assert err_l < 0.15 and err_p < 0.15, (err_l, err_p)

    print("KERNEL_OK")
</pallas_src>

<mosaic_0001>
module attributes {stable_mosaic.version = 11 : i64} {
  func.func @_gin_conv_kernel(%arg0: i32, %arg1: i32, %arg2: memref<128x128xi8, #tpu.memory_space<vmem>>, %arg3: memref<128x128xbf16, #tpu.memory_space<vmem>>, %arg4: memref<128x8xbf16, #tpu.memory_space<vmem>>, %arg5: memref<128x128xbf16, #tpu.memory_space<vmem>>, %arg6: memref<1x128xf32, #tpu.memory_space<vmem>>, %arg7: memref<128x128xbf16, #tpu.memory_space<vmem>>, %arg8: memref<1x128xf32, #tpu.memory_space<vmem>>, %arg9: memref<128x128xbf16, #tpu.memory_space<vmem>>, %arg10: memref<1x8x128xf32, #tpu.memory_space<vmem>>, %arg11: memref<128x128xf32, #tpu.memory_space<vmem>>) attributes {dimension_semantics = [#tpu.dimension_semantics<parallel>, #tpu.dimension_semantics<arbitrary>], iteration_bounds = array<i64: 1, 1>, scalar_prefetch = 0 : i64, scratch_operands = 1 : i64, tpu.core_type = #tpu.core_type<tc>, window_params = [{transform_indices = @transform_0, window_bounds = array<i64: 128, 128>}, {pipeline_mode = #tpu.pipeline_mode<synchronous>, transform_indices = @transform_1, window_bounds = array<i64: 128, 128>}, {transform_indices = @transform_2, window_bounds = array<i64: 128, 8>}, {pipeline_mode = #tpu.pipeline_mode<synchronous>, transform_indices = @transform_3, window_bounds = array<i64: 128, 128>}, {pipeline_mode = #tpu.pipeline_mode<synchronous>, transform_indices = @transform_4, window_bounds = array<i64: 1, 128>}, {pipeline_mode = #tpu.pipeline_mode<synchronous>, transform_indices = @transform_5, window_bounds = array<i64: 128, 128>}, {pipeline_mode = #tpu.pipeline_mode<synchronous>, transform_indices = @transform_6, window_bounds = array<i64: 1, 128>}, {transform_indices = @transform_7, window_bounds = array<i64: 128, 128>}, {transform_indices = @transform_8, window_bounds = array<i64: 1, 8, 128>}]} {
    %c0_i32 = arith.constant 0 : i32
    %0 = arith.cmpi eq, %arg1, %c0_i32 : i32
    %1 = arith.extui %0 : i1 to i32
    %c0_i32_0 = arith.constant 0 : i32
    %2 = arith.cmpi ne, %1, %c0_i32_0 : i32
    scf.if %2 {
      %cst_9 = arith.constant 0.000000e+00 : f32
      %16 = vector.broadcast %cst_9 : f32 to vector<128x128xf32>
      %c0_10 = arith.constant 0 : index
      %c0_11 = arith.constant 0 : index
      %17 = vector.load %arg11[%c0_10, %c0_11] : memref<128x128xf32, #tpu.memory_space<vmem>>, vector<128x128xf32>
      tpu.vector_store %arg11[%c0_10, %c0_11], %16 {strides = array<i32>} : memref<128x128xf32, #tpu.memory_space<vmem>>, vector<128x128xf32>,
    } else {
    }
    %c0 = arith.constant 0 : index
    %c0_1 = arith.constant 0 : index
    %3 = vector.load %arg2[%c0, %c0_1] : memref<128x128xi8, #tpu.memory_space<vmem>>, vector<128x128xi8>
    %4 = arith.sitofp %3 : vector<128x128xi8> to vector<128x128xbf16>
    %c128_i32 = arith.constant 128 : i32
    %5 = arith.muli %arg1, %c128_i32 : i32
    %6 = tpu.assume_multiple %5, 128 : i32
    %7 = arith.index_cast %6 : i32 to index
    %c0_2 = arith.constant 0 : index
    %8 = vector.load %arg3[%7, %c0_2] : memref<128x128xbf16, #tpu.memory_space<vmem>>, vector<128x128xbf16>
    %c0_3 = arith.constant 0 : index
    %c0_4 = arith.constant 0 : index
    %9 = vector.load %arg11[%c0_3, %c0_4] : memref<128x128xf32, #tpu.memory_space<vmem>>, vector<128x128xf32>
    %cst = arith.constant dense<0.000000e+00> : vector<128x128xf32>
    %10 = tpu.matmul %4, %8, %cst {dimension_numbers = #tpu.dot_dimension_numbers<[1], [0], [0], [1], [0, 0, 1, 1], [], []>} : vector<128x128xbf16>, vector<128x128xbf16>, vector<128x128xf32> -> vector<128x128xf32>
    %11 = arith.addf %9, %10 : vector<128x128xf32>
    %c0_5 = arith.constant 0 : index
    %c0_6 = arith.constant 0 : index
    %12 = vector.load %arg11[%c0_5, %c0_6] : memref<128x128xf32, #tpu.memory_space<vmem>>, vector<128x128xf32>
    tpu.vector_store %arg11[%c0_5, %c0_6], %11 {strides = array<i32>} : memref<128x128xf32, #tpu.memory_space<vmem>>, vector<128x128xf32>,
    %c0_i32_7 = arith.constant 0 : i32
    %13 = arith.cmpi eq, %arg1, %c0_i32_7 : i32
    %14 = arith.extui %13 : i1 to i32
    %c0_i32_8 = arith.constant 0 : i32
    %15 = arith.cmpi ne, %14, %c0_i32_8 : i32
    scf.if %15 {
      %cst_9 = arith.constant 0.000000e+00 : f32
      %16 = vector.broadcast %cst_9 : f32 to vector<8x128xf32>
      %c0_i32_10 = arith.constant 0 : i32
      %c128_i32_11 = arith.constant 128 : i32
      %17 = arith.muli %c0_i32_10, %c128_i32_11 : i32
      %18 = tpu.assume_multiple %17, 128 : i32
      %19 = arith.index_cast %18 : i32 to index
      %c0_12 = arith.constant 0 : index
      %20 = vector.load %arg11[%19, %c0_12] : memref<128x128xf32, #tpu.memory_space<vmem>>, vector<128x128xf32>
      %21 = arith.truncf %20 : vector<128x128xf32> to vector<128x128xbf16>
      %c0_13 = arith.constant 0 : index
      %c0_14 = arith.constant 0 : index
      %22 = vector.load %arg5[%c0_13, %c0_14] : memref<128x128xbf16, #tpu.memory_space<vmem>>, vector<128x128xbf16>
      %cst_15 = arith.constant dense<0.000000e+00> : vector<128x128xf32>
      %23 = tpu.matmul %21, %22, %cst_15 {dimension_numbers = #tpu.dot_dimension_numbers<[1], [0], [0], [1], [0, 0, 1, 1], [], []>} : vector<128x128xbf16>, vector<128x128xbf16>, vector<128x128xf32> -> vector<128x128xf32>
      %c0_16 = arith.constant 0 : index
      %c0_17 = arith.constant 0 : index
      %24 = vector.load %arg6[%c0_16, %c0_17] : memref<1x128xf32, #tpu.memory_space<vmem>>, vector<1x128xf32>
      %25 = vector.broadcast %24 : vector<1x128xf32> to vector<128x128xf32>
      %26 = arith.addf %23, %25 : vector<128x128xf32>
      %cst_18 = arith.constant 0.000000e+00 : f32
      %27 = vector.broadcast %cst_18 : f32 to vector<128x128xf32>
      %28 = arith.maximumf %26, %27 : vector<128x128xf32>
      %29 = arith.truncf %28 : vector<128x128xf32> to vector<128x128xbf16>
      %c0_19 = arith.constant 0 : index
      %c0_20 = arith.constant 0 : index
      %30 = vector.load %arg7[%c0_19, %c0_20] : memref<128x128xbf16, #tpu.memory_space<vmem>>, vector<128x128xbf16>
      %cst_21 = arith.constant dense<0.000000e+00> : vector<128x128xf32>
      %31 = tpu.matmul %29, %30, %cst_21 {dimension_numbers = #tpu.dot_dimension_numbers<[1], [0], [0], [1], [0, 0, 1, 1], [], []>} : vector<128x128xbf16>, vector<128x128xbf16>, vector<128x128xf32> -> vector<128x128xf32>
      %c0_22 = arith.constant 0 : index
      %c0_23 = arith.constant 0 : index
      %32 = vector.load %arg8[%c0_22, %c0_23] : memref<1x128xf32, #tpu.memory_space<vmem>>, vector<1x128xf32>
      %33 = vector.broadcast %32 : vector<1x128xf32> to vector<128x128xf32>
      %34 = arith.addf %31, %33 : vector<128x128xf32>
      %cst_24 = arith.constant 0.000000e+00 : f32
      %35 = vector.broadcast %cst_24 : f32 to vector<128x128xf32>
      %36 = arith.maximumf %34, %35 : vector<128x128xf32>
      %37 = arith.truncf %36 : vector<128x128xf32> to vector<128x128xbf16>
      %38 = arith.index_cast %18 : i32 to index
      %c0_25 = arith.constant 0 : index
      %39 = vector.load %arg9[%38, %c0_25] : memref<128x128xbf16, #tpu.memory_space<vmem>>, vector<128x128xbf16>
      tpu.vector_store %arg9[%38, %c0_25], %37 {strides = array<i32>} : memref<128x128xbf16, #tpu.memory_space<vmem>>, vector<128x128xbf16>,
      %40 = arith.index_cast %18 : i32 to index
      %c0_26 = arith.constant 0 : index
      %41 = vector.load %arg4[%40, %c0_26] : memref<128x8xbf16, #tpu.memory_space<vmem>>, vector<128x8xbf16>
      %cst_27 = arith.constant dense<0.000000e+00> : vector<8x128xf32>
      %42 = tpu.matmul %41, %37, %cst_27 {dimension_numbers = #tpu.dot_dimension_numbers<[0], [0], [1], [1], [0, 1, 1, 1], [], []>} : vector<128x8xbf16>, vector<128x128xbf16>, vector<8x128xf32> -> vector<8x128xf32>
      %43 = arith.addf %16, %42 : vector<8x128xf32>
      %c1_i32 = arith.constant 1 : i32
      %c0_28 = arith.constant 0 : index
      %c0_29 = arith.constant 0 : index
      %c0_30 = arith.constant 0 : index
      %44 = vector.load %arg10[%c0_28, %c0_29, %c0_30] : memref<1x8x128xf32, #tpu.memory_space<vmem>>, vector<1x8x128xf32>
      %45 = vector.shape_cast %44 : vector<1x8x128xf32> to vector<8x128xf32>
      %46 = vector.shape_cast %43 : vector<8x128xf32> to vector<1x8x128xf32>
      tpu.vector_store %arg10[%c0_28, %c0_29, %c0_30], %46 {strides = array<i32>} : memref<1x8x128xf32, #tpu.memory_space<vmem>>, vector<1x8x128xf32>,
    } else {
    }
    return
  }
  func.func @transform_0(%arg0: i32, %arg1: i32) -> (i32, i32) {
    %c0_i32 = arith.constant 0 : i32
    return %arg0, %arg1 : i32, i32
  }
  func.func @transform_1(%arg0: i32, %arg1: i32) -> (i32, i32) {
    %c0_i32 = arith.constant 0 : i32
    %c0_i32_0 = arith.constant 0 : i32
    %c0_i32_1 = arith.constant 0 : i32
    return %c0_i32, %c0_i32_0 : i32, i32
  }
  func.func @transform_2(%arg0: i32, %arg1: i32) -> (i32, i32) {
    %c0_i32 = arith.constant 0 : i32
    %c0_i32_0 = arith.constant 0 : i32
    return %arg0, %c0_i32 : i32, i32
  }
  func.func @transform_3(%arg0: i32, %arg1: i32) -> (i32, i32) {
    %c0_i32 = arith.constant 0 : i32
    %c0_i32_0 = arith.constant 0 : i32
    %c0_i32_1 = arith.constant 0 : i32
    return %c0_i32, %c0_i32_0 : i32, i32
  }
  func.func @transform_4(%arg0: i32, %arg1: i32) -> (i32, i32) {
    %c0_i32 = arith.constant 0 : i32
    %c0_i32_0 = arith.constant 0 : i32
    %c0_i32_1 = arith.constant 0 : i32
    return %c0_i32, %c0_i32_0 : i32, i32
  }
  func.func @transform_5(%arg0: i32, %arg1: i32) -> (i32, i32) {
    %c0_i32 = arith.constant 0 : i32
    %c0_i32_0 = arith.constant 0 : i32
    %c0_i32_1 = arith.constant 0 : i32
    return %c0_i32, %c0_i32_0 : i32, i32
  }
  func.func @transform_6(%arg0: i32, %arg1: i32) -> (i32, i32) {
    %c0_i32 = arith.constant 0 : i32
    %c0_i32_0 = arith.constant 0 : i32
    %c0_i32_1 = arith.constant 0 : i32
    return %c0_i32, %c0_i32_0 : i32, i32
  }
  func.func @transform_7(%arg0: i32, %arg1: i32) -> (i32, i32) {
    %c0_i32 = arith.constant 0 : i32
    %c0_i32_0 = arith.constant 0 : i32
    return %arg0, %c0_i32 : i32, i32
  }
  func.func @transform_8(%arg0: i32, %arg1: i32) -> (i32, i32, i32) {
    %c0_i32 = arith.constant 0 : i32
    %c0_i32_0 = arith.constant 0 : i32
    %c0_i32_1 = arith.constant 0 : i32
    return %arg0, %c0_i32, %c0_i32_0 : i32, i32, i32
  }
}

</mosaic_0001>

<llo_original>
// kernel: tpu_custom_call.1
$region0: #{tpu_custom_call.1}
  #allocation0 [shape = 'u32[]', space=smem, size = 0x4, offset = 0x4, fixed_abs, tag = 'smem constant byte address 0x4 - core index']
  #allocation1 [shape = 'u32[72,128]{1,0:T(1,128)}', space=vmem, size = 0x9000, scoped, tag = 'internal scratch']
  #allocation2 [shape = 'f32[128,128]{1,0:T(8,128)}', space=vmem, size = 0x10000, scoped, tag = 'scratch operand']
  %s0 = inlined_call_operand.hbm [shape: s8[128,128], index: 0, kind: input, shape index: {}]
  %s1 = inlined_call_operand.vmem [shape: bf16[128,128], index: 1, kind: input, shape index: {}]
  %s2 = inlined_call_operand.vmem [shape: bf16[128,8], index: 2, kind: input, shape index: {}]
  %s3 = inlined_call_operand.hbm [shape: bf16[128,128], index: 3, kind: input, shape index: {}]
  %s4 = inlined_call_operand.vmem [shape: f32[1,128], index: 4, kind: input, shape index: {}]
  %s5 = inlined_call_operand.hbm [shape: bf16[128,128], index: 5, kind: input, shape index: {}]
  %s6 = inlined_call_operand.vmem [shape: f32[1,128], index: 6, kind: input, shape index: {}]
  %s7 = inlined_call_operand.hbm [shape: bf16[128,128], index: 7, kind: output, shape index: {0}]
  %s8 = inlined_call_operand.hbm [shape: f32[1,8,128], index: 8, kind: output, shape index: {1}]
  %9 = xla_tuple %s7, %s8
  %s10 = sld [smem:[#allocation0]]
  $region66: #{tpu_custom_call.1} parent=0
    _
  %s12 = ssub.s32 1, %s10
  %s13 = scalar_select 0, %s12, %s10
  $region1: #{tpu_custom_call.1} parent=0
    #allocation3 [shape = 'u8[16384]{0}', space=vmem, size = 0x4000, scoped, tag = 'input window, operand 0, single buffered']
    #allocation4 [shape = 's32[1]{0}', space=sflag, size = 0x4, scoped, tag = 'scoped memory for tpu_custom_call.1']
    #allocation5 [shape = 's32[1]{0}', space=sflag, size = 0x4, scoped, tag = 'scoped memory for tpu_custom_call.1']
    #allocation6 [shape = 'u8[32768]{0}', space=vmem, size = 0x8000, scoped, tag = 'input window, operand 3, single buffered']
    #allocation7 [shape = 's32[1]{0}', space=sflag, size = 0x4, scoped, tag = 'scoped memory for tpu_custom_call.1']
    #allocation8 [shape = 'u8[32768]{0}', space=vmem, size = 0x8000, scoped, tag = 'input window, operand 5, single buffered']
    #allocation9 [shape = 'u8[32768]{0}', space=vmem, size = 0x8000, scoped, tag = 'output window, operand 0, single buffered']
    #allocation10 [shape = 'u8[4096]{0}', space=vmem, size = 0x1000, scoped, tag = 'output window, operand 1, single buffered']
    #allocation11 [shape = 's32[1]{0}', space=sflag, size = 0x4, scoped, tag = 'scoped memory for tpu_custom_call.1']
    %14 = vsyncpa [#allocation4], 0
    %15 = vsyncpa [#allocation7], 0
    %16 = vsyncpa [#allocation5], 0
    %17 = vsyncpa [#allocation11], 0
    // Predicated region
    $region2: #{tpu_custom_call.1} parent=1 // pred_check
      _
    $region3: #{tpu_custom_call.1} parent=1 // pred_check_branch
      %19 = sbr.rel (0) target = $region5
    $region4: #{tpu_custom_call.1} parent=1 // pred_region
      %21 = vsyncadd [#allocation4], 0
      %s22 = sshll.u32 %s0, 4
      %s23 = int_to_ptr.hbm [resolvable:$true] %s22
      %s24 = sshll.u32 [#allocation3], 4
      %s25 = int_to_ptr.vmem [resolvable:$true] %s24
      %30 = dma.hbm_to_vmem [thread:$0]  %s23, 512, %s25, [#allocation4], 128, 128, 8
    $region5: #{tpu_custom_call.1} parent=1 // pred_fallthru
      _
    // Predicated region
    $region6: #{tpu_custom_call.1} parent=1 // pred_check
      _
    $region7: #{tpu_custom_call.1} parent=1 // pred_check_branch
      %32 = sbr.rel (0) target = $region9
    $region8: #{tpu_custom_call.1} parent=1 // pred_region
      _
    $region9: #{tpu_custom_call.1} parent=1 // pred_fallthru
      _
    // Predicated region
    $region10: #{tpu_custom_call.1} parent=1 // pred_check
      _
    $region11: #{tpu_custom_call.1} parent=1 // pred_check_branch
      %34 = sbr.rel (0) target = $region13
    $region12: #{tpu_custom_call.1} parent=1 // pred_region
      _
    $region13: #{tpu_custom_call.1} parent=1 // pred_fallthru
      _
    // Predicated region
    $region14: #{tpu_custom_call.1} parent=1 // pred_check
      _
    $region15: #{tpu_custom_call.1} parent=1 // pred_check_branch
      %36 = sbr.rel (0) target = $region17
    $region16: #{tpu_custom_call.1} parent=1 // pred_region
      %38 = vsyncadd [#allocation7], 0
      %s39 = sshll.u32 %s3, 4
      %s40 = int_to_ptr.hbm [resolvable:$true] %s39
      %s41 = sshll.u32 [#allocation6], 4
      %s42 = int_to_ptr.vmem [resolvable:$true] %s41
      %47 = dma.hbm_to_vmem [thread:$0]  %s40, 1024, %s42, [#allocation7], 64, 64, 4
    $region17: #{tpu_custom_call.1} parent=1 // pred_fallthru
      _
    // Predicated region
    $region18: #{tpu_custom_call.1} parent=1 // pred_check
      _
    $region19: #{tpu_custom_call.1} parent=1 // pred_check_branch
      %49 = sbr.rel (0) target = $region21
    $region20: #{tpu_custom_call.1} parent=1 // pred_region
      _
    $region21: #{tpu_custom_call.1} parent=1 // pred_fallthru
      _
    // Predicated region
    $region22: #{tpu_custom_call.1} parent=1 // pred_check
      _
    $region23: #{tpu_custom_call.1} parent=1 // pred_check_branch
      %51 = sbr.rel (0) target = $region25
    $region24: #{tpu_custom_call.1} parent=1 // pred_region
      %53 = vsyncadd [#allocation7], 0
      %s54 = sshll.u32 %s5, 4
      %s55 = int_to_ptr.hbm [resolvable:$true] %s54
      %s56 = sshll.u32 [#allocation8], 4
      %s57 = int_to_ptr.vmem [resolvable:$true] %s56
      %62 = dma.hbm_to_vmem [thread:$0]  %s55, 1024, %s57, [#allocation7], 64, 64, 4
    $region25: #{tpu_custom_call.1} parent=1 // pred_fallthru
      _
    // Predicated region
    $region26: #{tpu_custom_call.1} parent=1 // pred_check
      _
    $region27: #{tpu_custom_call.1} parent=1 // pred_check_branch
      %64 = sbr.rel (0) target = $region29
    $region28: #{tpu_custom_call.1} parent=1 // pred_region
      _
    $region29: #{tpu_custom_call.1} parent=1 // pred_fallthru
      _
    // Predicated region
    $region30: #{tpu_custom_call.1} parent=1 // pred_check
      _
    $region31: #{tpu_custom_call.1} parent=1 // pred_check_branch
      %66 = sbr.rel (0) target = $region33
    $region32: #{tpu_custom_call.1} parent=1 // pred_region
      %68 = dma.done [#allocation4], 512
    $region33: #{tpu_custom_call.1} parent=1 // pred_fallthru
      _
    // Predicated region
    $region34: #{tpu_custom_call.1} parent=1 // pred_check
      _
    $region35: #{tpu_custom_call.1} parent=1 // pred_check_branch
      %70 = sbr.rel (0) target = $region37
    $region36: #{tpu_custom_call.1} parent=1 // pred_region
      %72 = dma.done [#allocation7], 1024
    $region37: #{tpu_custom_call.1} parent=1 // pred_fallthru
      _
    // Predicated region
    $region38: #{tpu_custom_call.1} parent=1 // pred_check
      _
    $region39: #{tpu_custom_call.1} parent=1 // pred_check_branch
      %74 = sbr.rel (0) target = $region41
    $region40: #{tpu_custom_call.1} parent=1 // pred_region
      %76 = dma.done [#allocation7], 1024
    $region41: #{tpu_custom_call.1} parent=1 // pred_fallthru
      _
    %p77 = scmp.eq.s32.totalorder 0, 0
    // Predicated region
    $region42: #{tpu_custom_call.1} parent=1 // pred_check
      %p78 = pneg %p77
    $region43: #{tpu_custom_call.1} parent=1 // pred_check_branch
      %80 = sbr.rel (%p78) target = $region45
    $region44: #{tpu_custom_call.1} parent=1 // pred_region
      %81 = vst [vmem:[#allocation2] sm:$0xff] 0.0
      %82 = vst [vmem:[#allocation2 + $0x8] sm:$0xff] 0.0
      %83 = vst [vmem:[#allocation2 + $0x10] sm:$0xff] 0.0
      %84 = vst [vmem:[#allocation2 + $0x18] sm:$0xff] 0.0
      %85 = vst [vmem:[#allocation2 + $0x20] sm:$0xff] 0.0
      %86 = vst [vmem:[#allocation2 + $0x28] sm:$0xff] 0.0
      %87 = vst [vmem:[#allocation2 + $0x30] sm:$0xff] 0.0
      %88 = vst [vmem:[#allocation2 + $0x38] sm:$0xff] 0.0
      %89 = vst [vmem:[#allocation2 + $0x40] sm:$0xff] 0.0
      %90 = vst [vmem:[#allocation2 + $0x48] sm:$0xff] 0.0
      %91 = vst [vmem:[#allocation2 + $0x50] sm:$0xff] 0.0
      %92 = vst [vmem:[#allocation2 + $0x58] sm:$0xff] 0.0
      %93 = vst [vmem:[#allocation2 + $0x60] sm:$0xff] 0.0
      %94 = vst [vmem:[#allocation2 + $0x68] sm:$0xff] 0.0
      %95 = vst [vmem:[#allocation2 + $0x70] sm:$0xff] 0.0
      %96 = vst [vmem:[#allocation2 + $0x78] sm:$0xff] 0.0
    $region45: #{tpu_custom_call.1} parent=1 // pred_fallthru
      _
    %v97 = vld [vmem:[#allocation3] sm:$0xff]
    %v98 = vld [vmem:[#allocation3 + $0x8] sm:$0xff]
    %v99 = vld [vmem:[#allocation3 + $0x10] sm:$0xff]
    %v100 = vld [vmem:[#allocation3 + $0x18] sm:$0xff]
    %v101 = vunpack.c.0.s8 %v97
    %v102 = vunpack.c.1.s8 %v97
    %v103 = vunpack.c.2.s8 %v97
    %v104 = vunpack.c.3.s8 %v97
    %v105 = vunpack.c.0.s8 %v98
    %v106 = vunpack.c.1.s8 %v98
    %v107 = vunpack.c.2.s8 %v98
    %v108 = vunpack.c.3.s8 %v98
    %v109 = vunpack.c.0.s8 %v99
    %v110 = vunpack.c.1.s8 %v99
    %v111 = vunpack.c.2.s8 %v99
    %v112 = vunpack.c.3.s8 %v99
    %v113 = vunpack.c.0.s8 %v100
    %v114 = vunpack.c.1.s8 %v100
    %v115 = vunpack.c.2.s8 %v100
    %v116 = vunpack.c.3.s8 %v100
    %v117 = vcvt.s32.f32 %v101
    %v118 = vcvt.s32.f32 %v102
    %v119 = vcvt.s32.f32 %v103
    %v120 = vcvt.s32.f32 %v104
    %v121 = vcvt.s32.f32 %v105
    %v122 = vcvt.s32.f32 %v106
    %v123 = vcvt.s32.f32 %v107
    %v124 = vcvt.s32.f32 %v108
    %v125 = vcvt.s32.f32 %v109
    %v126 = vcvt.s32.f32 %v110
    %v127 = vcvt.s32.f32 %v111
    %v128 = vcvt.s32.f32 %v112
    %v129 = vcvt.s32.f32 %v113
    %v130 = vcvt.s32.f32 %v114
    %v131 = vcvt.s32.f32 %v115
    %v132 = vcvt.s32.f32 %v116
    %v133 = vpack.c.bf16 %v118, %v117
    %v134 = vpack.c.bf16 %v120, %v119
    %v135 = vpack.c.bf16 %v122, %v121
    %v136 = vpack.c.bf16 %v124, %v123
    %v137 = vpack.c.bf16 %v126, %v125
    %v138 = vpack.c.bf16 %v128, %v127
    %v139 = vpack.c.bf16 %v130, %v129
    %v140 = vpack.c.bf16 %v132, %v131
    %s141 = smul.u32 0, 128
    %s142 = sshra.s32 %s141, 3
    %s143 = sand.u32 %s141, 7
    %s144 = smul.addr %s142, 4
    %s145 = scalar_lea.vmem %s1, %s144
    %v146 = vld [vmem:[%s145] sm:$0xf]
    %v147 = vld [vmem:[%s145 + $0x4] sm:$0xf]
    %v148 = vld [vmem:[%s145 + $0x8] sm:$0xf]
    %v149 = vld [vmem:[%s145 + $0xc] sm:$0xf]
    %v150 = vld [vmem:[%s145 + $0x10] sm:$0xf]
    %v151 = vld [vmem:[%s145 + $0x14] sm:$0xf]
    %v152 = vld [vmem:[%s145 + $0x18] sm:$0xf]
    %v153 = vld [vmem:[%s145 + $0x1c] sm:$0xf]
    %v154 = vld [vmem:[%s145 + $0x20] sm:$0xf]
    %v155 = vld [vmem:[%s145 + $0x24] sm:$0xf]
    %v156 = vld [vmem:[%s145 + $0x28] sm:$0xf]
    %v157 = vld [vmem:[%s145 + $0x2c] sm:$0xf]
    %v158 = vld [vmem:[%s145 + $0x30] sm:$0xf]
    %v159 = vld [vmem:[%s145 + $0x34] sm:$0xf]
    %v160 = vld [vmem:[%s145 + $0x38] sm:$0xf]
    %v161 = vld [vmem:[%s145 + $0x3c] sm:$0xf]
    %v162 = vld [vmem:[#allocation2] sm:$0xff]
    %v163 = vld [vmem:[#allocation2 + $0x8] sm:$0xff]
    %v164 = vld [vmem:[#allocation2 + $0x10] sm:$0xff]
    %v165 = vld [vmem:[#allocation2 + $0x18] sm:$0xff]
    %v166 = vld [vmem:[#allocation2 + $0x20] sm:$0xff]
    %v167 = vld [vmem:[#allocation2 + $0x28] sm:$0xff]
    %v168 = vld [vmem:[#allocation2 + $0x30] sm:$0xff]
    %v169 = vld [vmem:[#allocation2 + $0x38] sm:$0xff]
    %v170 = vld [vmem:[#allocation2 + $0x40] sm:$0xff]
    %v171 = vld [vmem:[#allocation2 + $0x48] sm:$0xff]
    %v172 = vld [vmem:[#allocation2 + $0x50] sm:$0xff]
    %v173 = vld [vmem:[#allocation2 + $0x58] sm:$0xff]
    %v174 = vld [vmem:[#allocation2 + $0x60] sm:$0xff]
    %v175 = vld [vmem:[#allocation2 + $0x68] sm:$0xff]
    %v176 = vld [vmem:[#allocation2 + $0x70] sm:$0xff]
    %v177 = vld [vmem:[#allocation2 + $0x78] sm:$0xff]
    %v194 = vunpack.c.l.b16 %v146
    %v195 = vunpack.c.l.b16 %v147
    %v196 = vunpack.c.l.b16 %v148
    %v197 = vunpack.c.l.b16 %v149
    %v198 = vunpack.c.l.b16 %v150
    %v199 = vunpack.c.l.b16 %v151
    %v200 = vunpack.c.l.b16 %v152
    %v201 = vunpack.c.l.b16 %v153
    %v202 = vunpack.c.l.b16 %v154
    %v203 = vunpack.c.l.b16 %v155
    %v204 = vunpack.c.l.b16 %v156
    %v205 = vunpack.c.l.b16 %v157
    %v206 = vunpack.c.l.b16 %v158
    %v207 = vunpack.c.l.b16 %v159
    %v208 = vunpack.c.l.b16 %v160
    %v209 = vunpack.c.l.b16 %v161
    %v210 = vpack.c.b16 %v195, %v194
    %v211 = vpack.c.b16 %v197, %v196
    %v212 = vpack.c.b16 %v199, %v198
    %v213 = vpack.c.b16 %v201, %v200
    %v214 = vpack.c.b16 %v203, %v202
    %v215 = vpack.c.b16 %v205, %v204
    %v216 = vpack.c.b16 %v207, %v206
    %v217 = vpack.c.b16 %v209, %v208
    %226 = vmatpush.bf16.msra.mxu0 %v217
    %227 = vmatpush.bf16.msra.mxu0 %v216
    %228 = vmatpush.bf16.msra.mxu0 %v215
    %229 = vmatpush.bf16.msra.mxu0 %v214
    %230 = vmatpush.bf16.msra.mxu0 %v213
    %231 = vmatpush.bf16.msra.mxu0 %v212
    %232 = vmatpush.bf16.msra.mxu0 %v211
    %233 = vmatpush.bf16.msra.mxu0 %v210
    %234 = vmatmul.bf16.gmra.mxu0 %v133
    %v235 = vpop.f32.mrf.mxu0
    %v236 = vadd.f32 0.0, %v235
    %v237 = vpop.f32.mrf.mxu0
    %v238 = vadd.f32 0.0, %v237
    %239 = vmatmul.bf16.gmra.mxu0 %v134
    %v240 = vpop.f32.mrf.mxu0
    %v241 = vadd.f32 0.0, %v240
    %v242 = vpop.f32.mrf.mxu0
    %v243 = vadd.f32 0.0, %v242
    %244 = vmatmul.bf16.gmra.mxu0 %v135
    %v245 = vpop.f32.mrf.mxu0
    %v246 = vadd.f32 0.0, %v245
    %v247 = vpop.f32.mrf.mxu0
    %v248 = vadd.f32 0.0, %v247
    %249 = vmatmul.bf16.gmra.mxu0 %v136
    %v250 = vpop.f32.mrf.mxu0
    %v251 = vadd.f32 0.0, %v250
    %v252 = vpop.f32.mrf.mxu0
    %v253 = vadd.f32 0.0, %v252
    %254 = vmatmul.bf16.gmra.mxu0 %v137
    %v255 = vpop.f32.mrf.mxu0
    %v256 = vadd.f32 0.0, %v255
    %v257 = vpop.f32.mrf.mxu0
    %v258 = vadd.f32 0.0, %v257
    %259 = vmatmul.bf16.gmra.mxu0 %v138
    %v260 = vpop.f32.mrf.mxu0
    %v261 = vadd.f32 0.0, %v260
    %v262 = vpop.f32.mrf.mxu0
    %v263 = vadd.f32 0.0, %v262
    %264 = vmatmul.bf16.gmra.mxu0 %v139
    %v265 = vpop.f32.mrf.mxu0
    %v266 = vadd.f32 0.0, %v265
    %v267 = vpop.f32.mrf.mxu0
    %v268 = vadd.f32 0.0, %v267
    %269 = vmatmul.bf16.gmra.mxu0 %v140
    %v270 = vpop.f32.mrf.mxu0
    %v271 = vadd.f32 0.0, %v270
    %v272 = vpop.f32.mrf.mxu0
    %v273 = vadd.f32 0.0, %v272
    %274 = vdwg.mxu0
    %v275 = vadd.f32 %v162, %v236
    %v276 = vadd.f32 %v163, %v238
    %v277 = vadd.f32 %v164, %v241
    %v278 = vadd.f32 %v165, %v243
    %v279 = vadd.f32 %v166, %v246
    %v280 = vadd.f32 %v167, %v248
    %v281 = vadd.f32 %v168, %v251
    %v282 = vadd.f32 %v169, %v253
    %v283 = vadd.f32 %v170, %v256
    %v284 = vadd.f32 %v171, %v258
    %v285 = vadd.f32 %v172, %v261
    %v286 = vadd.f32 %v173, %v263
    %v287 = vadd.f32 %v174, %v266
    %v288 = vadd.f32 %v175, %v268
    %v289 = vadd.f32 %v176, %v271
    %v290 = vadd.f32 %v177, %v273
    %291 = vst [vmem:[#allocation2] sm:$0xff] %v275
    %292 = vst [vmem:[#allocation2 + $0x8] sm:$0xff] %v276
    %293 = vst [vmem:[#allocation2 + $0x10] sm:$0xff] %v277
    %294 = vst [vmem:[#allocation2 + $0x18] sm:$0xff] %v278
    %295 = vst [vmem:[#allocation2 + $0x20] sm:$0xff] %v279
    %296 = vst [vmem:[#allocation2 + $0x28] sm:$0xff] %v280
    %297 = vst [vmem:[#allocation2 + $0x30] sm:$0xff] %v281
    %298 = vst [vmem:[#allocation2 + $0x38] sm:$0xff] %v282
    %299 = vst [vmem:[#allocation2 + $0x40] sm:$0xff] %v283
    %300 = vst [vmem:[#allocation2 + $0x48] sm:$0xff] %v284
    %301 = vst [vmem:[#allocation2 + $0x50] sm:$0xff] %v285
    %302 = vst [vmem:[#allocation2 + $0x58] sm:$0xff] %v286
    %303 = vst [vmem:[#allocation2 + $0x60] sm:$0xff] %v287
    %304 = vst [vmem:[#allocation2 + $0x68] sm:$0xff] %v288
    %305 = vst [vmem:[#allocation2 + $0x70] sm:$0xff] %v289
    %306 = vst [vmem:[#allocation2 + $0x78] sm:$0xff] %v290
    // Predicated region
    $region46: #{tpu_custom_call.1} parent=1 // pred_check
      %p307 = pneg %p77
    $region47: #{tpu_custom_call.1} parent=1 // pred_check_branch
      %309 = sbr.rel (%p307) target = $region49
    $region48: #{tpu_custom_call.1} parent=1 // pred_region
      %v310 = vld [vmem:[#allocation2] sm:$0xff]
      %v311 = vld [vmem:[#allocation2 + $0x8] sm:$0xff]
      %v312 = vld [vmem:[#allocation2 + $0x10] sm:$0xff]
      %v313 = vld [vmem:[#allocation2 + $0x18] sm:$0xff]
      %v314 = vld [vmem:[#allocation2 + $0x20] sm:$0xff]
      %v315 = vld [vmem:[#allocation2 + $0x28] sm:$0xff]
      %v316 = vld [vmem:[#allocation2 + $0x30] sm:$0xff]
      %v317 = vld [vmem:[#allocation2 + $0x38] sm:$0xff]
      %v318 = vld [vmem:[#allocation2 + $0x40] sm:$0xff]
      %v319 = vld [vmem:[#allocation2 + $0x48] sm:$0xff]
      %v320 = vld [vmem:[#allocation2 + $0x50] sm:$0xff]
      %v321 = vld [vmem:[#allocation2 + $0x58] sm:$0xff]
      %v322 = vld [vmem:[#allocation2 + $0x60] sm:$0xff]
      %v323 = vld [vmem:[#allocation2 + $0x68] sm:$0xff]
      %v324 = vld [vmem:[#allocation2 + $0x70] sm:$0xff]
      %v325 = vld [vmem:[#allocation2 + $0x78] sm:$0xff]
      %v326 = vpack.c.bf16 %v311, %v310
      %v327 = vpack.c.bf16 %v313, %v312
      %v328 = vpack.c.bf16 %v315, %v314
      %v329 = vpack.c.bf16 %v317, %v316
      %v330 = vpack.c.bf16 %v319, %v318
      %v331 = vpack.c.bf16 %v321, %v320
      %v332 = vpack.c.bf16 %v323, %v322
      %v333 = vpack.c.bf16 %v325, %v324
      %v334 = vld [vmem:[#allocation6] sm:$0xf]
      %v335 = vld [vmem:[#allocation6 + $0x4] sm:$0xf]
      %v336 = vld [vmem:[#allocation6 + $0x8] sm:$0xf]
      %v337 = vld [vmem:[#allocation6 + $0xc] sm:$0xf]
      %v338 = vld [vmem:[#allocation6 + $0x10] sm:$0xf]
      %v339 = vld [vmem:[#allocation6 + $0x14] sm:$0xf]
      %v340 = vld [vmem:[#allocation6 + $0x18] sm:$0xf]
      %v341 = vld [vmem:[#allocation6 + $0x1c] sm:$0xf]
      %v342 = vld [vmem:[#allocation6 + $0x20] sm:$0xf]
      %v343 = vld [vmem:[#allocation6 + $0x24] sm:$0xf]
      %v344 = vld [vmem:[#allocation6 + $0x28] sm:$0xf]
      %v345 = vld [vmem:[#allocation6 + $0x2c] sm:$0xf]
      %v346 = vld [vmem:[#allocation6 + $0x30] sm:$0xf]
      %v347 = vld [vmem:[#allocation6 + $0x34] sm:$0xf]
      %v348 = vld [vmem:[#allocation6 + $0x38] sm:$0xf]
      %v349 = vld [vmem:[#allocation6 + $0x3c] sm:$0xf]
      %v350 = vld [vmem:[%s4] sm:$0x1]
      %v352 = vperm.slane %v350, 0
      %v370 = vunpack.c.l.b16 %v334
      %v371 = vunpack.c.l.b16 %v335
      %v372 = vunpack.c.l.b16 %v336
      %v373 = vunpack.c.l.b16 %v337
      %v374 = vunpack.c.l.b16 %v338
      %v375 = vunpack.c.l.b16 %v339
      %v376 = vunpack.c.l.b16 %v340
      %v377 = vunpack.c.l.b16 %v341
      %v378 = vunpack.c.l.b16 %v342
      %v379 = vunpack.c.l.b16 %v343
      %v380 = vunpack.c.l.b16 %v344
      %v381 = vunpack.c.l.b16 %v345
      %v382 = vunpack.c.l.b16 %v346
      %v383 = vunpack.c.l.b16 %v347
      %v384 = vunpack.c.l.b16 %v348
      %v385 = vunpack.c.l.b16 %v349
      %v386 = vpack.c.b16 %v371, %v370
      %v387 = vpack.c.b16 %v373, %v372
      %v388 = vpack.c.b16 %v375, %v374
      %v389 = vpack.c.b16 %v377, %v376
      %v390 = vpack.c.b16 %v379, %v378
      %v391 = vpack.c.b16 %v381, %v380
      %v392 = vpack.c.b16 %v383, %v382
      %v393 = vpack.c.b16 %v385, %v384
      %402 = vmatpush.bf16.msra.mxu0 %v393
      %403 = vmatpush.bf16.msra.mxu0 %v392
      %404 = vmatpush.bf16.msra.mxu0 %v391
      %405 = vmatpush.bf16.msra.mxu0 %v390
      %406 = vmatpush.bf16.msra.mxu0 %v389
      %407 = vmatpush.bf16.msra.mxu0 %v388
      %408 = vmatpush.bf16.msra.mxu0 %v387
      %409 = vmatpush.bf16.msra.mxu0 %v386
      %410 = vmatmul.bf16.gmra.mxu0 %v326
      %v411 = vpop.f32.mrf.mxu0
      %v412 = vadd.f32 %v352, %v411
      %v413 = vpop.f32.mrf.mxu0
      %v414 = vadd.f32 %v352, %v413
      %415 = vmatmul.bf16.gmra.mxu0 %v327
      %v416 = vpop.f32.mrf.mxu0
      %v417 = vadd.f32 %v352, %v416
      %v418 = vpop.f32.mrf.mxu0
      %v419 = vadd.f32 %v352, %v418
      %420 = vmatmul.bf16.gmra.mxu0 %v328
      %v421 = vpop.f32.mrf.mxu0
      %v422 = vadd.f32 %v352, %v421
      %v423 = vpop.f32.mrf.mxu0
      %v424 = vadd.f32 %v352, %v423
      %425 = vmatmul.bf16.gmra.mxu0 %v329
      %v426 = vpop.f32.mrf.mxu0
      %v427 = vadd.f32 %v352, %v426
      %v428 = vpop.f32.mrf.mxu0
      %v429 = vadd.f32 %v352, %v428
      %430 = vmatmul.bf16.gmra.mxu0 %v330
      %v431 = vpop.f32.mrf.mxu0
      %v432 = vadd.f32 %v352, %v431
      %v433 = vpop.f32.mrf.mxu0
      %v434 = vadd.f32 %v352, %v433
      %435 = vmatmul.bf16.gmra.mxu0 %v331
      %v436 = vpop.f32.mrf.mxu0
      %v437 = vadd.f32 %v352, %v436
      %v438 = vpop.f32.mrf.mxu0
      %v439 = vadd.f32 %v352, %v438
      %440 = vmatmul.bf16.gmra.mxu0 %v332
      %v441 = vpop.f32.mrf.mxu0
      %v442 = vadd.f32 %v352, %v441
      %v443 = vpop.f32.mrf.mxu0
      %v444 = vadd.f32 %v352, %v443
      %445 = vmatmul.bf16.gmra.mxu0 %v333
      %v446 = vpop.f32.mrf.mxu0
      %v447 = vadd.f32 %v352, %v446
      %v448 = vpop.f32.mrf.mxu0
      %v449 = vadd.f32 %v352, %v448
      %450 = vdwg.mxu0
      %v451 = vmax.f32 %v412, 0.0
      %v452 = vmax.f32 %v414, 0.0
      %v453 = vmax.f32 %v417, 0.0
      %v454 = vmax.f32 %v419, 0.0
      %v455 = vmax.f32 %v422, 0.0
      %v456 = vmax.f32 %v424, 0.0
      %v457 = vmax.f32 %v427, 0.0
      %v458 = vmax.f32 %v429, 0.0
      %v459 = vmax.f32 %v432, 0.0
      %v460 = vmax.f32 %v434, 0.0
      %v461 = vmax.f32 %v437, 0.0
      %v462 = vmax.f32 %v439, 0.0
      %v463 = vmax.f32 %v442, 0.0
      %v464 = vmax.f32 %v444, 0.0
      %v465 = vmax.f32 %v447, 0.0
      %v466 = vmax.f32 %v449, 0.0
      %v467 = vpack.c.bf16 %v452, %v451
      %v468 = vpack.c.bf16 %v454, %v453
      %v469 = vpack.c.bf16 %v456, %v455
      %v470 = vpack.c.bf16 %v458, %v457
      %v471 = vpack.c.bf16 %v460, %v459
      %v472 = vpack.c.bf16 %v462, %v461
      %v473 = vpack.c.bf16 %v464, %v463
      %v474 = vpack.c.bf16 %v466, %v465
      %v475 = vld [vmem:[#allocation8] sm:$0xf]
      %v476 = vld [vmem:[#allocation8 + $0x4] sm:$0xf]
      %v477 = vld [vmem:[#allocation8 + $0x8] sm:$0xf]
      %v478 = vld [vmem:[#allocation8 + $0xc] sm:$0xf]
      %v479 = vld [vmem:[#allocation8 + $0x10] sm:$0xf]
      %v480 = vld [vmem:[#allocation8 + $0x14] sm:$0xf]
      %v481 = vld [vmem:[#allocation8 + $0x18] sm:$0xf]
      %v482 = vld [vmem:[#allocation8 + $0x1c] sm:$0xf]
      %v483 = vld [vmem:[#allocation8 + $0x20] sm:$0xf]
      %v484 = vld [vmem:[#allocation8 + $0x24] sm:$0xf]
      %v485 = vld [vmem:[#allocation8 + $0x28] sm:$0xf]
      %v486 = vld [vmem:[#allocation8 + $0x2c] sm:$0xf]
      %v487 = vld [vmem:[#allocation8 + $0x30] sm:$0xf]
      %v488 = vld [vmem:[#allocation8 + $0x34] sm:$0xf]
      %v489 = vld [vmem:[#allocation8 + $0x38] sm:$0xf]
      %v490 = vld [vmem:[#allocation8 + $0x3c] sm:$0xf]
      %v491 = vld [vmem:[%s6] sm:$0x1]
      %v493 = vperm.slane %v491, 0
      %v511 = vunpack.c.l.b16 %v475
      %v512 = vunpack.c.l.b16 %v476
      %v513 = vunpack.c.l.b16 %v477
      %v514 = vunpack.c.l.b16 %v478
      %v515 = vunpack.c.l.b16 %v479
      %v516 = vunpack.c.l.b16 %v480
      %v517 = vunpack.c.l.b16 %v481
      %v518 = vunpack.c.l.b16 %v482
      %v519 = vunpack.c.l.b16 %v483
      %v520 = vunpack.c.l.b16 %v484
      %v521 = vunpack.c.l.b16 %v485
      %v522 = vunpack.c.l.b16 %v486
      %v523 = vunpack.c.l.b16 %v487
      %v524 = vunpack.c.l.b16 %v488
      %v525 = vunpack.c.l.b16 %v489
      %v526 = vunpack.c.l.b16 %v490
      %v527 = vpack.c.b16 %v512, %v511
      %v528 = vpack.c.b16 %v514, %v513
      %v529 = vpack.c.b16 %v516, %v515
      %v530 = vpack.c.b16 %v518, %v517
      %v531 = vpack.c.b16 %v520, %v519
      %v532 = vpack.c.b16 %v522, %v521
      %v533 = vpack.c.b16 %v524, %v523
      %v534 = vpack.c.b16 %v526, %v525
      %543 = vmatpush.bf16.msra.mxu0 %v534
      %544 = vmatpush.bf16.msra.mxu0 %v533
      %545 = vmatpush.bf16.msra.mxu0 %v532
      %546 = vmatpush.bf16.msra.mxu0 %v531
      %547 = vmatpush.bf16.msra.mxu0 %v530
      %548 = vmatpush.bf16.msra.mxu0 %v529
      %549 = vmatpush.bf16.msra.mxu0 %v528
      %550 = vmatpush.bf16.msra.mxu0 %v527
      %551 = vmatmul.bf16.gmra.mxu0 %v467
      %v552 = vpop.f32.mrf.mxu0
      %v553 = vadd.f32 %v493, %v552
      %v554 = vpop.f32.mrf.mxu0
      %v555 = vadd.f32 %v493, %v554
      %556 = vmatmul.bf16.gmra.mxu0 %v468
      %v557 = vpop.f32.mrf.mxu0
      %v558 = vadd.f32 %v493, %v557
      %v559 = vpop.f32.mrf.mxu0
      %v560 = vadd.f32 %v493, %v559
      %561 = vmatmul.bf16.gmra.mxu0 %v469
      %v562 = vpop.f32.mrf.mxu0
      %v563 = vadd.f32 %v493, %v562
      %v564 = vpop.f32.mrf.mxu0
      %v565 = vadd.f32 %v493, %v564
      %566 = vmatmul.bf16.gmra.mxu0 %v470
      %v567 = vpop.f32.mrf.mxu0
      %v568 = vadd.f32 %v493, %v567
      %v569 = vpop.f32.mrf.mxu0
      %v570 = vadd.f32 %v493, %v569
      %571 = vmatmul.bf16.gmra.mxu0 %v471
      %v572 = vpop.f32.mrf.mxu0
      %v573 = vadd.f32 %v493, %v572
      %v574 = vpop.f32.mrf.mxu0
      %v575 = vadd.f32 %v493, %v574
      %576 = vmatmul.bf16.gmra.mxu0 %v472
      %v577 = vpop.f32.mrf.mxu0
      %v578 = vadd.f32 %v493, %v577
      %v579 = vpop.f32.mrf.mxu0
      %v580 = vadd.f32 %v493, %v579
      %581 = vmatmul.bf16.gmra.mxu0 %v473
      %v582 = vpop.f32.mrf.mxu0
      %v583 = vadd.f32 %v493, %v582
      %v584 = vpop.f32.mrf.mxu0
      %v585 = vadd.f32 %v493, %v584
      %586 = vmatmul.bf16.gmra.mxu0 %v474
      %v587 = vpop.f32.mrf.mxu0
      %v588 = vadd.f32 %v493, %v587
      %v589 = vpop.f32.mrf.mxu0
      %v590 = vadd.f32 %v493, %v589
      %591 = vdwg.mxu0
      %v592 = vmax.f32 %v553, 0.0
      %v593 = vmax.f32 %v555, 0.0
      %v594 = vmax.f32 %v558, 0.0
      %v595 = vmax.f32 %v560, 0.0
      %v596 = vmax.f32 %v563, 0.0
      %v597 = vmax.f32 %v565, 0.0
      %v598 = vmax.f32 %v568, 0.0
      %v599 = vmax.f32 %v570, 0.0
      %v600 = vmax.f32 %v573, 0.0
      %v601 = vmax.f32 %v575, 0.0
      %v602 = vmax.f32 %v578, 0.0
      %v603 = vmax.f32 %v580, 0.0
      %v604 = vmax.f32 %v583, 0.0
      %v605 = vmax.f32 %v585, 0.0
      %v606 = vmax.f32 %v588, 0.0
      %v607 = vmax.f32 %v590, 0.0
      %v608 = vpack.c.bf16 %v592, %v592
      %v609 = vpack.c.bf16 %v593, %v593
      %v610 = vpack.c.bf16 %v594, %v594
      %v611 = vpack.c.bf16 %v595, %v595
      %v612 = vpack.c.bf16 %v596, %v596
      %v613 = vpack.c.bf16 %v597, %v597
      %v614 = vpack.c.bf16 %v598, %v598
      %v615 = vpack.c.bf16 %v599, %v599
      %v616 = vpack.c.bf16 %v600, %v600
      %v617 = vpack.c.bf16 %v601, %v601
      %v618 = vpack.c.bf16 %v602, %v602
      %v619 = vpack.c.bf16 %v603, %v603
      %v620 = vpack.c.bf16 %v604, %v604
      %v621 = vpack.c.bf16 %v605, %v605
      %v622 = vpack.c.bf16 %v606, %v606
      %v623 = vpack.c.bf16 %v607, %v607
      %624 = vst [vmem:[#allocation9] sm:$0xf] %v608
      %625 = vst [vmem:[#allocation9 + $0x4] sm:$0xf] %v609
      %626 = vst [vmem:[#allocation9 + $0x8] sm:$0xf] %v610
      %627 = vst [vmem:[#allocation9 + $0xc] sm:$0xf] %v611
      %628 = vst [vmem:[#allocation9 + $0x10] sm:$0xf] %v612
      %629 = vst [vmem:[#allocation9 + $0x14] sm:$0xf] %v613
      %630 = vst [vmem:[#allocation9 + $0x18] sm:$0xf] %v614
      %631 = vst [vmem:[#allocation9 + $0x1c] sm:$0xf] %v615
      %632 = vst [vmem:[#allocation9 + $0x20] sm:$0xf] %v616
      %633 = vst [vmem:[#allocation9 + $0x24] sm:$0xf] %v617
      %634 = vst [vmem:[#allocation9 + $0x28] sm:$0xf] %v618
      %635 = vst [vmem:[#allocation9 + $0x2c] sm:$0xf] %v619
      %636 = vst [vmem:[#allocation9 + $0x30] sm:$0xf] %v620
      %637 = vst [vmem:[#allocation9 + $0x34] sm:$0xf] %v621
      %638 = vst [vmem:[#allocation9 + $0x38] sm:$0xf] %v622
      %639 = vst [vmem:[#allocation9 + $0x3c] sm:$0xf] %v623
      %v640 = vld [vmem:[%s2] sm:$0xf]
      %v641 = vld [vmem:[%s2 + $0x4] sm:$0xf]
      %v642 = vld [vmem:[%s2 + $0x8] sm:$0xf]
      %v643 = vld [vmem:[%s2 + $0xc] sm:$0xf]
      %v644 = vld [vmem:[%s2 + $0x10] sm:$0xf]
      %v645 = vld [vmem:[%s2 + $0x14] sm:$0xf]
      %v646 = vld [vmem:[%s2 + $0x18] sm:$0xf]
      %v647 = vld [vmem:[%s2 + $0x1c] sm:$0xf]
      %v648 = vld [vmem:[%s2 + $0x20] sm:$0xf]
      %v649 = vld [vmem:[%s2 + $0x24] sm:$0xf]
      %v650 = vld [vmem:[%s2 + $0x28] sm:$0xf]
      %v651 = vld [vmem:[%s2 + $0x2c] sm:$0xf]
      %v652 = vld [vmem:[%s2 + $0x30] sm:$0xf]
      %v653 = vld [vmem:[%s2 + $0x34] sm:$0xf]
      %v654 = vld [vmem:[%s2 + $0x38] sm:$0xf]
      %v655 = vld [vmem:[%s2 + $0x3c] sm:$0xf]
      %v672 = vunpack.c.l.b16 %v640
      %v673 = vunpack.c.l.b16 %v641
      %v674 = vunpack.c.l.b16 %v642
      %v675 = vunpack.c.l.b16 %v643
      %v676 = vunpack.c.l.b16 %v644
      %v677 = vunpack.c.l.b16 %v645
      %v678 = vunpack.c.l.b16 %v646
      %v679 = vunpack.c.l.b16 %v647
      %v680 = vunpack.c.l.b16 %v648
      %v681 = vunpack.c.l.b16 %v649
      %v682 = vunpack.c.l.b16 %v650
      %v683 = vunpack.c.l.b16 %v651
      %v684 = vunpack.c.l.b16 %v652
      %v685 = vunpack.c.l.b16 %v653
      %v686 = vunpack.c.l.b16 %v654
      %v687 = vunpack.c.l.b16 %v655
      %v688 = vpack.c.b16 %v673, %v672
      %v689 = vpack.c.b16 %v675, %v674
      %v690 = vpack.c.b16 %v677, %v676
      %v691 = vpack.c.b16 %v679, %v678
      %v692 = vpack.c.b16 %v681, %v680
      %v693 = vpack.c.b16 %v683, %v682
      %v694 = vpack.c.b16 %v685, %v684
      %v695 = vpack.c.b16 %v687, %v686
      %704 = vxpose.xlu0.c.b16.start [1/8] %v688, 128
      %705 = vxpose.xlu0.c.b16.cont [2/8] %v689, 128
      %706 = vxpose.xlu0.c.b16.cont [3/8] %v690, 128
      %707 = vxpose.xlu0.c.b16.cont [4/8] %v691, 128
      %708 = vxpose.xlu0.c.b16.cont [5/8] %v692, 128
      %709 = vxpose.xlu0.c.b16.cont [6/8] %v693, 128
      %710 = vxpose.xlu0.c.b16.cont [7/8] %v694, 128
      %711 = vxpose.xlu0.c.b16.end [8/8] %v695, 128
      %v712 = vpop.trf.xlu0
      %v713 = vpop.trf.xlu0
      %v714 = vpop.trf.xlu0
      %v715 = vpop.trf.xlu0
      %v716 = vpop.trf.xlu0
      %v717 = vpop.trf.xlu0
      %v718 = vpop.trf.xlu0
      %v719 = vpop.trf.xlu0
      %v736 = vunpack.c.l.b16 %v608
      %v737 = vunpack.c.l.b16 %v609
      %v738 = vunpack.c.l.b16 %v610
      %v739 = vunpack.c.l.b16 %v611
      %v740 = vunpack.c.l.b16 %v612
      %v741 = vunpack.c.l.b16 %v613
      %v742 = vunpack.c.l.b16 %v614
      %v743 = vunpack.c.l.b16 %v615
      %v744 = vunpack.c.l.b16 %v616
      %v745 = vunpack.c.l.b16 %v617
      %v746 = vunpack.c.l.b16 %v618
      %v747 = vunpack.c.l.b16 %v619
      %v748 = vunpack.c.l.b16 %v620
      %v749 = vunpack.c.l.b16 %v621
      %v750 = vunpack.c.l.b16 %v622
      %v751 = vunpack.c.l.b16 %v623
      %v752 = vpack.c.b16 %v737, %v736
      %v753 = vpack.c.b16 %v739, %v738
      %v754 = vpack.c.b16 %v741, %v740
      %v755 = vpack.c.b16 %v743, %v742
      %v756 = vpack.c.b16 %v745, %v744
      %v757 = vpack.c.b16 %v747, %v746
      %v758 = vpack.c.b16 %v749, %v748
      %v759 = vpack.c.b16 %v751, %v750
      %768 = vmatpush.bf16.msra.mxu0 %v759
      %769 = vmatpush.bf16.msra.mxu0 %v758
      %770 = vmatpush.bf16.msra.mxu0 %v757
      %771 = vmatpush.bf16.msra.mxu0 %v756
      %772 = vmatpush.bf16.msra.mxu0 %v755
      %773 = vmatpush.bf16.msra.mxu0 %v754
      %774 = vmatpush.bf16.msra.mxu0 %v753
      %775 = vmatpush.bf16.msra.mxu0 %v752
      %776 = vmatmul.bf16.gmra.mxu0 %v712
      %v777 = vpop.f32.mrf.mxu0
      %v778 = vadd.f32 0.0, %v777
      %v779 = vpop.f32.mrf.mxu0
      %780 = vdwg.mxu0
      %781 = vst [vmem:[#allocation10] sm:$0xff] %v778
    $region49: #{tpu_custom_call.1} parent=1 // pred_fallthru
      _
    // Predicated region
    $region50: #{tpu_custom_call.1} parent=1 // pred_check
      _
    $region51: #{tpu_custom_call.1} parent=1 // pred_check_branch
      %783 = sbr.rel (0) target = $region53
    $region52: #{tpu_custom_call.1} parent=1 // pred_region
      %785 = vsyncadd [#allocation5], 0
      %s786 = sshll.u32 [#allocation9], 4
      %s787 = int_to_ptr.vmem [resolvable:$true] %s786
      %s788 = sshll.u32 %s7, 4
      %s789 = int_to_ptr.hbm [resolvable:$true] %s788
      %794 = dma.vmem_to_hbm [thread:$0]  %s787, 1024, %s789, [#allocation5], 64, 64, 4
    $region53: #{tpu_custom_call.1} parent=1 // pred_fallthru
      _
    // Predicated region
    $region54: #{tpu_custom_call.1} parent=1 // pred_check
      _
    $region55: #{tpu_custom_call.1} parent=1 // pred_check_branch
      %796 = sbr.rel (0) target = $region57
    $region56: #{tpu_custom_call.1} parent=1 // pred_region
      %798 = vsyncadd [#allocation11], 0
      %s800 = sshll.u32 [#allocation10], 4
      %s801 = int_to_ptr.vmem [resolvable:$true] %s800
      %s802 = sshll.u32 %s8, 4
      %s803 = int_to_ptr.hbm [resolvable:$true] %s802
      %805 = dma.vmem_to_hbm [thread:$0]  %s801, 128, %s803, [#allocation11]
    $region57: #{tpu_custom_call.1} parent=1 // pred_fallthru
      _
    // Predicated region
    $region58: #{tpu_custom_call.1} parent=1 // pred_check
      _
    $region59: #{tpu_custom_call.1} parent=1 // pred_check_branch
      %807 = sbr.rel (0) target = $region61
    $region60: #{tpu_custom_call.1} parent=1 // pred_region
      %809 = dma.done [#allocation5], 1024
    $region61: #{tpu_custom_call.1} parent=1 // pred_fallthru
      _
    // Predicated region
    $region62: #{tpu_custom_call.1} parent=1 // pred_check
      _
    $region63: #{tpu_custom_call.1} parent=1 // pred_check_branch
      %811 = sbr.rel (0) target = $region65
    $region64: #{tpu_custom_call.1} parent=1 // pred_region
      %813 = dma.done [#allocation11], 128
    $region65: #{tpu_custom_call.1} parent=1 // pred_fallthru
      _
    %814 = vsyncpa [#allocation4], 1
    %815 = vsyncpa [#allocation7], 1
    %816 = vsyncpa [#allocation5], 1
    %817 = vsyncpa [#allocation11], 1

</llo_original>
